<compile_context>
chip_gen: v6e
topology: v6e:2x2x1
jax: 0.10.0
libtpu: 0.0.40
codegen_flags: <defaults>
</compile_context>

<pallas_src>
import functools

import jax
import jax.numpy as jnp
from jax import lax
from jax.experimental import pallas as pl
from jax.experimental.pallas import tpu as pltpu

FILTER_CHANNEL = 4   # C
SE_CHANNELS = 8      # hidden width of the SE bottleneck

_STREAM_VMEM_LIMIT = 32 * 1024 * 1024   # streaming fallback limit (v5e-safe)
_STREAM_BLOCK_BYTES = 1 << 20           # ~1 MiB x-blocks in the fallback


def _round_up(a, b):
    return (a + b - 1) // b * b


_VMEM_CAP = None


def _chip_vmem_capacity():
    """Physical VMEM per TensorCore (v5e/v6e: 128 MiB, v7x: 64 MiB)."""
    global _VMEM_CAP
    if _VMEM_CAP is None:
        try:
            _VMEM_CAP = int(pltpu.get_tpu_info().vmem_capacity_bytes)
        except Exception:   # conservative fallback = smallest (v7x)
            _VMEM_CAP = 64 * 1024 * 1024
    return _VMEM_CAP


def _blockdiag_params(w1, b1, w2, b2, B, C):
    """Re-express the excitation MLP so every activation is a (rows, 1) column.

    h_col   = relu(W1bd @ y_col + b1_col)          W1bd = kron(I_B, w1.T)
    gate    = sigmoid(W2g  @ h_col + b2g)          W2g  = kron(I_B, w2[:, :C].T)
    bias    =          W2b @ h_col + b2b           W2b  = kron(I_B, w2[:, C:].T)

    Tiny, weight-only, built once outside the kernels (off the streaming path).
    """
    f32 = jnp.float32
    eye = jnp.eye(B, dtype=f32)
    w1f = w1.astype(f32)
    w2f = w2.astype(f32)
    w1bd = jnp.kron(eye, w1f.T)                                     # (B*SE, B*C)
    b1c = jnp.tile(b1.astype(f32).reshape(-1, 1), (B, 1))           # (B*SE, 1)
    w2g = jnp.kron(eye, w2f[:, :C].T)                               # (B*C, B*SE)
    w2b = jnp.kron(eye, w2f[:, C:].T)                               # (B*C, B*SE)
    b2g = jnp.tile(b2[0, :C].astype(f32).reshape(-1, 1), (B, 1))    # (B*C, 1)
    b2b = jnp.tile(b2[0, C:].astype(f32).reshape(-1, 1), (B, 1))    # (B*C, 1)
    return w1bd, b1c, w2g, b2g, w2b, b2b


def _mlp_cols(y_col, w1bd, b1c, w2g, b2g, w2b, b2b):
    """Excitation MLP on column vectors; returns gate / bias as (R, 1)."""
    h = jnp.dot(w1bd, y_col, preferred_element_type=jnp.float32) + b1c
    h = jnp.maximum(h, 0.0)
    gate = jax.nn.sigmoid(
        jnp.dot(w2g, h, preferred_element_type=jnp.float32) + b2g)
    bias = jnp.dot(w2b, h, preferred_element_type=jnp.float32) + b2b
    return gate, bias


# ---------------------------------------------------------------------------
# Fused path: one pallas_call, x resident in VMEM (pool + MLP + scale-shift).
# ---------------------------------------------------------------------------
def _se_fused(x2, params, inv_hw, vmem_limit):
    R, HW = x2.shape

    def kernel(x_ref, w1bd_ref, b1c_ref, w2g_ref, b2g_ref, w2b_ref, b2b_ref,
               o_ref):
        x = x_ref[...].astype(jnp.float32)                       # (R, HW)
        y = jnp.sum(x, axis=1, keepdims=True) * inv_hw           # (R, 1)
        gate, bias = _mlp_cols(y, w1bd_ref[...], b1c_ref[...], w2g_ref[...],
                               b2g_ref[...], w2b_ref[...], b2b_ref[...])
        o_ref[...] = (gate * x + bias).astype(o_ref.dtype)       # (R, HW)

    return pl.pallas_call(
        kernel,
        out_shape=jax.ShapeDtypeStruct((R, HW), x2.dtype),
        compiler_params=pltpu.CompilerParams(vmem_limit_bytes=vmem_limit),
    )(x2, *params)


# ---------------------------------------------------------------------------
# Streaming fallback (x too large for VMEM residency): two pallas_calls.
# ---------------------------------------------------------------------------
def _se_streamed(x2, params, inv_hw):
    R, HW = x2.shape
    w1bd, b1c, w2g, b2g, w2b, b2b = params
    elt = x2.dtype.itemsize
    vmem = pltpu.MemorySpace.VMEM

    # Large lane tiles (multiple of 128, ~1 MiB x-blocks) -> few grid steps.
    hw_full = _round_up(HW, 128)
    hw_tile = max(512, (_STREAM_BLOCK_BYTES // max(R * elt, 1)) // 128 * 128)
    hw_tile = min(hw_full, hw_tile)
    num_hw = pl.cdiv(HW, hw_tile)
    has_tail = (HW % hw_tile) != 0

    def pinned(shape):
        return pl.BlockSpec(shape, lambda j: (0,) * len(shape),
                            memory_space=vmem)

    # ---- Pass 1: lane-tiled sum + (1/HW, excitation MLP) in the finalize. ----
    def pool_mlp_kernel(x_ref, w1bd_ref, b1c_ref, w2g_ref, b2g_ref, w2b_ref,
                        b2b_ref, gate_ref, bias_ref, sum_ref):
        j = pl.program_id(0)

        @pl.when(j == 0)
        def _():
            sum_ref[...] = jnp.zeros_like(sum_ref)

        xb = x_ref[...].astype(jnp.float32)                      # (R, hw_tile)
        if has_tail:
            # Partial-block padding content is unspecified -> mask it out.
            lane = lax.broadcasted_iota(jnp.int32, xb.shape, 1)
            xb = jnp.where(j * hw_tile + lane < HW, xb, 0.0)
        sum_ref[...] += jnp.sum(xb, axis=1, keepdims=True)

        @pl.when(j == pl.num_programs(0) - 1)
        def _():
            y = sum_ref[...] * inv_hw                            # (R, 1)
            gate, bias = _mlp_cols(y, w1bd_ref[...], b1c_ref[...],
                                   w2g_ref[...], b2g_ref[...],
                                   w2b_ref[...], b2b_ref[...])
            gate_ref[...] = gate
            bias_ref[...] = bias

    gate, bias = pl.pallas_call(
        pool_mlp_kernel,
        out_shape=(jax.ShapeDtypeStruct((R, 1), jnp.float32),
                   jax.ShapeDtypeStruct((R, 1), jnp.float32)),
        grid_spec=pltpu.PrefetchScalarGridSpec(
            num_scalar_prefetch=0,
            grid=(num_hw,),
            in_specs=[
                pl.BlockSpec((R, hw_tile), lambda j: (0, j),
                             memory_space=vmem),
                pinned(w1bd.shape), pinned(b1c.shape),
                pinned(w2g.shape), pinned(b2g.shape),
                pinned(w2b.shape), pinned(b2b.shape),
            ],
            out_specs=[pinned((R, 1)), pinned((R, 1))],
            scratch_shapes=[pltpu.VMEM((R, 1), jnp.float32)],
        ),
        compiler_params=pltpu.CompilerParams(
            # TODO(synk): on v7x (2 TCs) split this reduction into two
            # core-local partial sums so both cores stream HBM for pass 1.
            dimension_semantics=("arbitrary",),
            vmem_limit_bytes=_STREAM_VMEM_LIMIT,
        ),
    )(x2, w1bd, b1c, w2g, b2g, w2b, b2b)

    # ---- Pass 2: streaming out = gate * x + bias (gate/bias pinned). ----
    def scale_shift_kernel(x_ref, gate_ref, bias_ref, o_ref):
        x = x_ref[...].astype(jnp.float32)
        o_ref[...] = (gate_ref[...] * x + bias_ref[...]).astype(o_ref.dtype)

    out2 = pl.pallas_call(
        scale_shift_kernel,
        out_shape=jax.ShapeDtypeStruct((R, HW), x2.dtype),
        grid_spec=pltpu.PrefetchScalarGridSpec(
            num_scalar_prefetch=0,
            grid=(num_hw,),
            in_specs=[
                pl.BlockSpec((R, hw_tile), lambda j: (0, j),
                             memory_space=vmem),
                pinned((R, 1)), pinned((R, 1)),
            ],
            out_specs=pl.BlockSpec((R, hw_tile), lambda j: (0, j),
                                   memory_space=vmem),
        ),
        compiler_params=pltpu.CompilerParams(
            dimension_semantics=("parallel",),   # shared across TCs on v7x
            vmem_limit_bytes=_STREAM_VMEM_LIMIT,
        ),
        # NOTE: pass input_output_aliases={0: 0} here if the caller no longer
        # needs x (saves the output allocation; bandwidth is unchanged).
    )(x2, gate, bias)
    return out2


@functools.partial(jax.jit, static_argnames=("force_stream",))
def se_layer(x, w1, b1, w2, b2, *, force_stream=False):
    """x: (B, C, H, W) NCHW, like the PyTorch module."""
    B, C, H, W = x.shape
    HW = H * W
    R = B * C
    inv_hw = 1.0 / float(HW)

    x2 = x.reshape(R, HW)                       # contiguous collapse: free
    params = _blockdiag_params(w1, b1, w2, b2, B, C)

    cap = _chip_vmem_capacity()
    x_f32_bytes = R * HW * 4
    # Fused path needs the input block + an f32 working copy + the output
    # block (+ headroom) to fit the per-chip scoped VMEM.
    fused_ok = (6 * x_f32_bytes + (8 << 20)) <= (cap - (2 << 20))
    fused_limit = int(min(cap - (2 << 20),
                          max(32 << 20, 6 * x_f32_bytes + (8 << 20))))

    if fused_ok and not force_stream:
        out2 = _se_fused(x2, params, inv_hw, fused_limit)
    else:
        # TODO(synk): the streaming fallback keeps all B*C rows in one block;
        # an extremely large batch (B*C in the many-thousands) would also need
        # batch-aligned row tiling of the reduction / MLP.
        out2 = _se_streamed(x2, params, inv_hw)
    return out2.reshape(B, C, H, W)


def se_layer_ref(x, w1, b1, w2, b2):
    """Pure-JAX reference mirroring the PyTorch forward, for validation."""
    B, C, H, W = x.shape
    y = jnp.mean(x.astype(jnp.float32), axis=(2, 3))
    h = jax.nn.relu(y @ w1 + b1[0])
    z = h @ w2 + b2[0]
    gate = jax.nn.sigmoid(z[:, :C]).reshape(B, C, 1, 1)
    bias = z[:, C:].reshape(B, C, 1, 1)
    return (gate * x + bias).astype(x.dtype)


if __name__ == "__main__":
    key = jax.random.PRNGKey(0)
    kx, kw1, kb1, kw2, kb2 = jax.random.split(key, 5)

    # PyTorch Linear is y = x @ W.T + b; weights stored pre-transposed (in, out).
    w1 = jax.random.normal(kw1, (FILTER_CHANNEL, SE_CHANNELS), jnp.float32) * 0.1
    b1 = jax.random.normal(kb1, (1, SE_CHANNELS), jnp.float32) * 0.1
    w2 = jax.random.normal(kw2, (SE_CHANNELS, 2 * FILTER_CHANNEL), jnp.float32) * 0.1
    b2 = jax.random.normal(kb2, (1, 2 * FILTER_CHANNEL), jnp.float32) * 0.1

    def check(x, **kw):
        out = jax.block_until_ready(se_layer(x, w1, b1, w2, b2, **kw))
        ref = se_layer_ref(x, w1, b1, w2, b2)
        assert out.shape == x.shape
        assert jnp.allclose(out, ref, atol=1e-5, rtol=1e-4), \
            f"mismatch shape={x.shape} kw={kw}"

    C = FILTER_CHANNEL
    # Small shape implied by the module (fully fused single-kernel path).
    check(jax.random.normal(kx, (2, C, 16, 16), jnp.float32))
    # Non-multiple-of-128 spatial extent and B*C not a multiple of 8.
    check(jax.random.normal(kx, (3, C, 20, 20), jnp.float32))
    # Larger spatial extent, still fused / VMEM-resident.
    check(jax.random.normal(kx, (2, C, 64, 64), jnp.float32))
    # Force the streaming fallback: multi-step lane-tiled reduction with a
    # masked partial trailing tile + pinned-gate scale-shift pass.
    check(jax.random.normal(kx, (2, C, 200, 200), jnp.float32), force_stream=True)

    print("KERNEL_OK")
</pallas_src>

<mosaic_0001>
module attributes {stable_mosaic.version = 11 : i64} {
  func.func @kernel(%arg0: memref<8x256xf32, #tpu.memory_space<vmem>>, %arg1: memref<16x8xf32, #tpu.memory_space<vmem>>, %arg2: memref<16x1xf32, #tpu.memory_space<vmem>>, %arg3: memref<8x16xf32, #tpu.memory_space<vmem>>, %arg4: memref<8x1xf32, #tpu.memory_space<vmem>>, %arg5: memref<8x16xf32, #tpu.memory_space<vmem>>, %arg6: memref<8x1xf32, #tpu.memory_space<vmem>>, %arg7: memref<8x256xf32, #tpu.memory_space<vmem>>) attributes {dimension_semantics = [], scalar_prefetch = 0 : i64, scratch_operands = 0 : i64, tpu.core_type = #tpu.core_type<tc>} {
    %c0 = arith.constant 0 : index
    %c0_0 = arith.constant 0 : index
    %0 = vector.load %arg0[%c0, %c0_0] : memref<8x256xf32, #tpu.memory_space<vmem>>, vector<8x256xf32>
    %cst = arith.constant dense<0.000000e+00> : vector<8xf32>
    %1 = vector.multi_reduction <add>, %0, %cst [1] : vector<8x256xf32> to vector<8xf32>
    %2 = vector.shape_cast %1 : vector<8xf32> to vector<8x1xf32>
    %cst_1 = arith.constant 3.906250e-03 : f32
    %3 = vector.broadcast %cst_1 : f32 to vector<8x1xf32>
    %4 = arith.mulf %2, %3 : vector<8x1xf32>
    %c0_2 = arith.constant 0 : index
    %c0_3 = arith.constant 0 : index
    %5 = vector.load %arg1[%c0_2, %c0_3] : memref<16x8xf32, #tpu.memory_space<vmem>>, vector<16x8xf32>
    %c0_4 = arith.constant 0 : index
    %c0_5 = arith.constant 0 : index
    %6 = vector.load %arg2[%c0_4, %c0_5] : memref<16x1xf32, #tpu.memory_space<vmem>>, vector<16x1xf32>
    %c0_6 = arith.constant 0 : index
    %c0_7 = arith.constant 0 : index
    %7 = vector.load %arg3[%c0_6, %c0_7] : memref<8x16xf32, #tpu.memory_space<vmem>>, vector<8x16xf32>
    %c0_8 = arith.constant 0 : index
    %c0_9 = arith.constant 0 : index
    %8 = vector.load %arg4[%c0_8, %c0_9] : memref<8x1xf32, #tpu.memory_space<vmem>>, vector<8x1xf32>
    %c0_10 = arith.constant 0 : index
    %c0_11 = arith.constant 0 : index
    %9 = vector.load %arg5[%c0_10, %c0_11] : memref<8x16xf32, #tpu.memory_space<vmem>>, vector<8x16xf32>
    %c0_12 = arith.constant 0 : index
    %c0_13 = arith.constant 0 : index
    %10 = vector.load %arg6[%c0_12, %c0_13] : memref<8x1xf32, #tpu.memory_space<vmem>>, vector<8x1xf32>
    %cst_14 = arith.constant dense<0.000000e+00> : vector<16x1xf32>
    %11 = tpu.matmul %5, %4, %cst_14 {dimension_numbers = #tpu.dot_dimension_numbers<[1], [0], [0], [1], [0, 0, 1, 1], [], []>} : vector<16x8xf32>, vector<8x1xf32>, vector<16x1xf32> -> vector<16x1xf32>
    %12 = arith.addf %11, %6 : vector<16x1xf32>
    %cst_15 = arith.constant 0.000000e+00 : f32
    %13 = vector.broadcast %cst_15 : f32 to vector<16x1xf32>
    %14 = arith.maximumf %12, %13 : vector<16x1xf32>
    %cst_16 = arith.constant dense<0.000000e+00> : vector<8x1xf32>
    %15 = tpu.matmul %7, %14, %cst_16 {dimension_numbers = #tpu.dot_dimension_numbers<[1], [0], [0], [1], [0, 0, 1, 1], [], []>} : vector<8x16xf32>, vector<16x1xf32>, vector<8x1xf32> -> vector<8x1xf32>
    %16 = arith.addf %15, %8 : vector<8x1xf32>
    %17 = arith.negf %16 : vector<8x1xf32>
    %18 = math.exp %17 : vector<8x1xf32>
    %cst_17 = arith.constant 1.000000e+00 : f32
    %19 = vector.broadcast %cst_17 : f32 to vector<8x1xf32>
    %20 = arith.addf %19, %18 : vector<8x1xf32>
    %21 = arith.divf %19, %20 : vector<8x1xf32>
    %cst_18 = arith.constant dense<0.000000e+00> : vector<8x1xf32>
    %22 = tpu.matmul %9, %14, %cst_18 {dimension_numbers = #tpu.dot_dimension_numbers<[1], [0], [0], [1], [0, 0, 1, 1], [], []>} : vector<8x16xf32>, vector<16x1xf32>, vector<8x1xf32> -> vector<8x1xf32>
    %23 = arith.addf %22, %10 : vector<8x1xf32>
    %24 = vector.broadcast %21 : vector<8x1xf32> to vector<8x256xf32>
    %25 = arith.mulf %24, %0 : vector<8x256xf32>
    %26 = vector.broadcast %23 : vector<8x1xf32> to vector<8x256xf32>
    %27 = arith.addf %25, %26 : vector<8x256xf32>
    %c0_19 = arith.constant 0 : index
    %c0_20 = arith.constant 0 : index
    %28 = vector.load %arg7[%c0_19, %c0_20] : memref<8x256xf32, #tpu.memory_space<vmem>>, vector<8x256xf32>
    tpu.vector_store %arg7[%c0_19, %c0_20], %27 {strides = array<i32>} : memref<8x256xf32, #tpu.memory_space<vmem>>, vector<8x256xf32>,
    return
  }
}

</mosaic_0001>

<llo_original>
// kernel: se_layer.1
$region0: #{se_layer.1}
  #allocation0 [shape = 'u32[]', space=smem, size = 0x4, offset = 0x4, fixed_abs, tag = 'smem constant byte address 0x4 - core index']
  #allocation1 [shape = 'u32[144,128]{1,0:T(1,128)}', space=vmem, size = 0x12000, scoped, tag = 'internal scratch']
  %s0 = inlined_call_operand.vmem [shape: f32[8,256], index: 0, kind: input, shape index: {}]
  %s1 = inlined_call_operand.vmem [shape: f32[16,8], index: 1, kind: input, shape index: {}]
  %s2 = inlined_call_operand.vmem [shape: f32[16,1], index: 2, kind: input, shape index: {}]
  %s3 = inlined_call_operand.vmem [shape: f32[8,16], index: 3, kind: input, shape index: {}]
  %s4 = inlined_call_operand.vmem [shape: f32[8,1], index: 4, kind: input, shape index: {}]
  %s5 = inlined_call_operand.vmem [shape: f32[8,16], index: 5, kind: input, shape index: {}]
  %s6 = inlined_call_operand.vmem [shape: f32[8,1], index: 6, kind: input, shape index: {}]
  %s7 = inlined_call_operand.vmem [shape: f32[8,256], index: 7, kind: output, shape index: {}]
  %s8 = sld [smem:[#allocation0]]
  $region38: #{se_layer.1} parent=0
    _
  %s10 = ssub.s32 1, %s8
  %s11 = scalar_select 0, %s10, %s8
  // Predicated region
  $region2: #{se_layer.1} parent=0 // pred_check
    _
  $region3: #{se_layer.1} parent=0 // pred_check_branch
    %13 = sbr.rel (0) target = $region5
  $region4: #{se_layer.1} parent=0 // pred_region
    _
  $region5: #{se_layer.1} parent=0 // pred_fallthru
    _
  // Predicated region
  $region6: #{se_layer.1} parent=0 // pred_check
    _
  $region7: #{se_layer.1} parent=0 // pred_check_branch
    %15 = sbr.rel (0) target = $region9
  $region8: #{se_layer.1} parent=0 // pred_region
    _
  $region9: #{se_layer.1} parent=0 // pred_fallthru
    _
  // Predicated region
  $region10: #{se_layer.1} parent=0 // pred_check
    _
  $region11: #{se_layer.1} parent=0 // pred_check_branch
    %17 = sbr.rel (0) target = $region13
  $region12: #{se_layer.1} parent=0 // pred_region
    _
  $region13: #{se_layer.1} parent=0 // pred_fallthru
    _
  // Predicated region
  $region14: #{se_layer.1} parent=0 // pred_check
    _
  $region15: #{se_layer.1} parent=0 // pred_check_branch
    %19 = sbr.rel (0) target = $region17
  $region16: #{se_layer.1} parent=0 // pred_region
    _
  $region17: #{se_layer.1} parent=0 // pred_fallthru
    _
  // Predicated region
  $region18: #{se_layer.1} parent=0 // pred_check
    _
  $region19: #{se_layer.1} parent=0 // pred_check_branch
    %21 = sbr.rel (0) target = $region21
  $region20: #{se_layer.1} parent=0 // pred_region
    _
  $region21: #{se_layer.1} parent=0 // pred_fallthru
    _
  // Predicated region
  $region22: #{se_layer.1} parent=0 // pred_check
    _
  $region23: #{se_layer.1} parent=0 // pred_check_branch
    %23 = sbr.rel (0) target = $region25
  $region24: #{se_layer.1} parent=0 // pred_region
    _
  $region25: #{se_layer.1} parent=0 // pred_fallthru
    _
  // Predicated region
  $region26: #{se_layer.1} parent=0 // pred_check
    _
  $region27: #{se_layer.1} parent=0 // pred_check_branch
    %25 = sbr.rel (0) target = $region29
  $region28: #{se_layer.1} parent=0 // pred_region
    _
  $region29: #{se_layer.1} parent=0 // pred_fallthru
    _
  %v26 = vld [vmem:[%s0] sm:$0xff]
  %v27 = vld [vmem:[%s0 + $0x8] sm:$0xff]
  %v28 = vadd.f32 %v26, %v27
  %29 = vadd.xlane.f32.xlu0 %v28
  %v30 = vpop.xlane.xlu0 %29
  %v31 = vmul.f32 %v30, 0.00390625
  %v32 = vld [vmem:[%s1] sm:$0xff]
  %v33 = vld [vmem:[%s1 + $0x8] sm:$0xff]
  %v34 = vld [vmem:[%s2] sm:$0xff]
  %v35 = vld [vmem:[%s2 + $0x8] sm:$0xff]
  %v36 = vld [vmem:[%s3] sm:$0xff]
  %v37 = vld [vmem:[%s4] sm:$0xff]
  %v38 = vld [vmem:[%s5] sm:$0xff]
  %v39 = vld [vmem:[%s6] sm:$0xff]
  %vm40 = vcmask 64512
  %v42 = vsel %vm40, %v32, 0
  %v45 = vsel %vm40, %v33, 0
  %47 = vmatprep.subr.mxu0 0.0
  %48 = vmatpush1.msra.mxu0 0.0
  %49 = vmatprep.subr.mxu0 0.0
  %50 = vmatpush1.msra.mxu0 0.0
  %51 = vmatprep.subr.mxu0 0.0
  %52 = vmatpush1.msra.mxu0 0.0
  %53 = vmatprep.subr.mxu0 0.0
  %54 = vmatpush1.msra.mxu0 0.0
  %55 = vmatprep.subr.mxu0 0.0
  %56 = vmatpush1.msra.mxu0 0.0
  %57 = vmatprep.subr.mxu0 0.0
  %58 = vmatpush1.msra.mxu0 0.0
  %59 = vmatprep.subr.mxu0 0.0
  %60 = vmatpush1.msra.mxu0 0.0
  %61 = vmatprep.subr.mxu0 0.0
  %62 = vmatpush1.msra.mxu0 0.0
  %63 = vmatprep.subr.mxu0 0.0
  %64 = vmatpush1.msra.mxu0 0.0
  %65 = vmatprep.subr.mxu0 0.0
  %66 = vmatpush1.msra.mxu0 0.0
  %67 = vmatprep.subr.mxu0 0.0
  %68 = vmatpush1.msra.mxu0 0.0
  %69 = vmatprep.subr.mxu0 0.0
  %70 = vmatpush1.msra.mxu0 0.0
  %71 = vmatprep.subr.mxu0 0.0
  %72 = vmatpush1.msra.mxu0 0.0
  %73 = vmatprep.subr.mxu0 0.0
  %74 = vmatpush1.msra.mxu0 0.0
  %75 = vmatprep.subr.mxu0 0.0
  %76 = vmatpush1.msra.mxu0 0.0
  %77 = vmatprep.subr.mxu0 0.0
  %78 = vmatpush1.msra.mxu0 %v31
  %79 = vmatprep.subr.mxu0 0.0
  %80 = vmatpush2.msra.mxu0 0.0
  %81 = vmatprep.subr.mxu0 0.0
  %82 = vmatpush2.msra.mxu0 0.0
  %83 = vmatprep.subr.mxu0 0.0
  %84 = vmatpush2.msra.mxu0 0.0
  %85 = vmatprep.subr.mxu0 0.0
  %86 = vmatpush2.msra.mxu0 0.0
  %87 = vmatprep.subr.mxu0 0.0
  %88 = vmatpush2.msra.mxu0 0.0
  %89 = vmatprep.subr.mxu0 0.0
  %90 = vmatpush2.msra.mxu0 0.0
  %91 = vmatprep.subr.mxu0 0.0
  %92 = vmatpush2.msra.mxu0 0.0
  %93 = vmatprep.subr.mxu0 0.0
  %94 = vmatpush2.msra.mxu0 0.0
  %95 = vmatprep.subr.mxu0 0.0
  %96 = vmatpush2.msra.mxu0 0.0
  %97 = vmatprep.subr.mxu0 0.0
  %98 = vmatpush2.msra.mxu0 0.0
  %99 = vmatprep.subr.mxu0 0.0
  %100 = vmatpush2.msra.mxu0 0.0
  %101 = vmatprep.subr.mxu0 0.0
  %102 = vmatpush2.msra.mxu0 0.0
  %103 = vmatprep.subr.mxu0 0.0
  %104 = vmatpush2.msra.mxu0 0.0
  %105 = vmatprep.subr.mxu0 0.0
  %106 = vmatpush2.msra.mxu0 0.0
  %107 = vmatprep.subr.mxu0 0.0
  %108 = vmatpush2.msra.mxu0 0.0
  %109 = vmatprep.subr.mxu0 0.0
  %110 = vmatpush2.msra.mxu0 0.0
  %111 = vmatprep.mubr.f32.mxu0 0.0
  %112 = vmatmul.mubr.f32.gmra.mxu0 %v42
  %v113 = vpop.f32.mrf.mxu0
  %v114 = vadd.f32 %v34, %v113
  %v115 = vpop.f32.mrf.mxu0
  %116 = vmatprep.mubr.f32.mxu0 0.0
  %117 = vmatmul.mubr.f32.gmra.mxu0 %v45
  %v118 = vpop.f32.mrf.mxu0
  %v119 = vadd.f32 %v35, %v118
  %v120 = vpop.f32.mrf.mxu0
  %121 = vdwg.mxu0
  %v122 = vmax.f32 %v114, 0.0
  %v123 = vmax.f32 %v119, 0.0
  %vm124 = vcmask 130048
  %v126 = vsel %vm124, %v36, 0
  %128 = vmatprep.subr.mxu0 0.0
  %129 = vmatpush1.msra.mxu0 0.0
  %130 = vmatprep.subr.mxu0 0.0
  %131 = vmatpush1.msra.mxu0 0.0
  %132 = vmatprep.subr.mxu0 0.0
  %133 = vmatpush1.msra.mxu0 0.0
  %134 = vmatprep.subr.mxu0 0.0
  %135 = vmatpush1.msra.mxu0 0.0
  %136 = vmatprep.subr.mxu0 0.0
  %137 = vmatpush1.msra.mxu0 0.0
  %138 = vmatprep.subr.mxu0 0.0
  %139 = vmatpush1.msra.mxu0 0.0
  %140 = vmatprep.subr.mxu0 0.0
  %141 = vmatpush1.msra.mxu0 0.0
  %142 = vmatprep.subr.mxu0 0.0
  %143 = vmatpush1.msra.mxu0 0.0
  %144 = vmatprep.subr.mxu0 0.0
  %145 = vmatpush1.msra.mxu0 0.0
  %146 = vmatprep.subr.mxu0 0.0
  %147 = vmatpush1.msra.mxu0 0.0
  %148 = vmatprep.subr.mxu0 0.0
  %149 = vmatpush1.msra.mxu0 0.0
  %150 = vmatprep.subr.mxu0 0.0
  %151 = vmatpush1.msra.mxu0 0.0
  %152 = vmatprep.subr.mxu0 0.0
  %153 = vmatpush1.msra.mxu0 0.0
  %154 = vmatprep.subr.mxu0 0.0
  %155 = vmatpush1.msra.mxu0 0.0
  %156 = vmatprep.subr.mxu0 0.0
  %157 = vmatpush1.msra.mxu0 %v123
  %158 = vmatprep.subr.mxu0 0.0
  %159 = vmatpush1.msra.mxu0 %v122
  %160 = vmatprep.subr.mxu0 0.0
  %161 = vmatpush2.msra.mxu0 0.0
  %162 = vmatprep.subr.mxu0 0.0
  %163 = vmatpush2.msra.mxu0 0.0
  %164 = vmatprep.subr.mxu0 0.0
  %165 = vmatpush2.msra.mxu0 0.0
  %166 = vmatprep.subr.mxu0 0.0
  %167 = vmatpush2.msra.mxu0 0.0
  %168 = vmatprep.subr.mxu0 0.0
  %169 = vmatpush2.msra.mxu0 0.0
  %170 = vmatprep.subr.mxu0 0.0
  %171 = vmatpush2.msra.mxu0 0.0
  %172 = vmatprep.subr.mxu0 0.0
  %173 = vmatpush2.msra.mxu0 0.0
  %174 = vmatprep.subr.mxu0 0.0
  %175 = vmatpush2.msra.mxu0 0.0
  %176 = vmatprep.subr.mxu0 0.0
  %177 = vmatpush2.msra.mxu0 0.0
  %178 = vmatprep.subr.mxu0 0.0
  %179 = vmatpush2.msra.mxu0 0.0
  %180 = vmatprep.subr.mxu0 0.0
  %181 = vmatpush2.msra.mxu0 0.0
  %182 = vmatprep.subr.mxu0 0.0
  %183 = vmatpush2.msra.mxu0 0.0
  %184 = vmatprep.subr.mxu0 0.0
  %185 = vmatpush2.msra.mxu0 0.0
  %186 = vmatprep.subr.mxu0 0.0
  %187 = vmatpush2.msra.mxu0 0.0
  %188 = vmatprep.subr.mxu0 0.0
  %189 = vmatpush2.msra.mxu0 0.0
  %190 = vmatprep.subr.mxu0 0.0
  %191 = vmatpush2.msra.mxu0 0.0
  %192 = vmatprep.mubr.f32.mxu0 0.0
  %193 = vmatmul.mubr.f32.gmra.mxu0 %v126
  %v194 = vpop.f32.mrf.mxu0
  %v195 = vadd.f32 %v37, %v194
  %v196 = vpop.f32.mrf.mxu0
  %197 = vdwg.mxu0
  %v198 = vxor.u32 %v195, 2147483648
  %v199 = vmul.f32 %v198, 1.442695
  %v200 = vpow.pop %v199
  %v201 = vadd.f32 %v200, 1.0
  %v202 = vrcp.pop %v201
  %v203 = vmul.f32 1.0, %v202
  %v205 = vsel %vm124, %v38, 0
  %207 = vmatprep.subr.mxu0 0.0
  %208 = vmatpush1.msra.mxu0 0.0
  %209 = vmatprep.subr.mxu0 0.0
  %210 = vmatpush1.msra.mxu0 0.0
  %211 = vmatprep.subr.mxu0 0.0
  %212 = vmatpush1.msra.mxu0 0.0
  %213 = vmatprep.subr.mxu0 0.0
  %214 = vmatpush1.msra.mxu0 0.0
  %215 = vmatprep.subr.mxu0 0.0
  %216 = vmatpush1.msra.mxu0 0.0
  %217 = vmatprep.subr.mxu0 0.0
  %218 = vmatpush1.msra.mxu0 0.0
  %219 = vmatprep.subr.mxu0 0.0
  %220 = vmatpush1.msra.mxu0 0.0
  %221 = vmatprep.subr.mxu0 0.0
  %222 = vmatpush1.msra.mxu0 0.0
  %223 = vmatprep.subr.mxu0 0.0
  %224 = vmatpush1.msra.mxu0 0.0
  %225 = vmatprep.subr.mxu0 0.0
  %226 = vmatpush1.msra.mxu0 0.0
  %227 = vmatprep.subr.mxu0 0.0
  %228 = vmatpush1.msra.mxu0 0.0
  %229 = vmatprep.subr.mxu0 0.0
  %230 = vmatpush1.msra.mxu0 0.0
  %231 = vmatprep.subr.mxu0 0.0
  %232 = vmatpush1.msra.mxu0 0.0
  %233 = vmatprep.subr.mxu0 0.0
  %234 = vmatpush1.msra.mxu0 0.0
  %235 = vmatprep.subr.mxu0 0.0
  %236 = vmatpush1.msra.mxu0 %v123
  %237 = vmatprep.subr.mxu0 0.0
  %238 = vmatpush1.msra.mxu0 %v122
  %239 = vmatprep.subr.mxu0 0.0
  %240 = vmatpush2.msra.mxu0 0.0
  %241 = vmatprep.subr.mxu0 0.0
  %242 = vmatpush2.msra.mxu0 0.0
  %243 = vmatprep.subr.mxu0 0.0
  %244 = vmatpush2.msra.mxu0 0.0
  %245 = vmatprep.subr.mxu0 0.0
  %246 = vmatpush2.msra.mxu0 0.0
  %247 = vmatprep.subr.mxu0 0.0
  %248 = vmatpush2.msra.mxu0 0.0
  %249 = vmatprep.subr.mxu0 0.0
  %250 = vmatpush2.msra.mxu0 0.0
  %251 = vmatprep.subr.mxu0 0.0
  %252 = vmatpush2.msra.mxu0 0.0
  %253 = vmatprep.subr.mxu0 0.0
  %254 = vmatpush2.msra.mxu0 0.0
  %255 = vmatprep.subr.mxu0 0.0
  %256 = vmatpush2.msra.mxu0 0.0
  %257 = vmatprep.subr.mxu0 0.0
  %258 = vmatpush2.msra.mxu0 0.0
  %259 = vmatprep.subr.mxu0 0.0
  %260 = vmatpush2.msra.mxu0 0.0
  %261 = vmatprep.subr.mxu0 0.0
  %262 = vmatpush2.msra.mxu0 0.0
  %263 = vmatprep.subr.mxu0 0.0
  %264 = vmatpush2.msra.mxu0 0.0
  %265 = vmatprep.subr.mxu0 0.0
  %266 = vmatpush2.msra.mxu0 0.0
  %267 = vmatprep.subr.mxu0 0.0
  %268 = vmatpush2.msra.mxu0 0.0
  %269 = vmatprep.subr.mxu0 0.0
  %270 = vmatpush2.msra.mxu0 0.0
  %271 = vmatprep.mubr.f32.mxu0 0.0
  %272 = vmatmul.mubr.f32.gmra.mxu0 %v205
  %v273 = vpop.f32.mrf.mxu0
  %v274 = vadd.f32 %v39, %v273
  %v275 = vpop.f32.mrf.mxu0
  %276 = vdwg.mxu0
  %278 = vset.pattern.permute.xlu0 0
  %279 = vperm.xlu0 %278, %v203
  %v280 = vpop.permute.xlu0 %279
  %v282 = vmul.f32 %v280, %v26
  %v283 = vmul.f32 %v280, %v27
  %285 = vset.pattern.permute.xlu0 0
  %286 = vperm.xlu0 %285, %v274
  %v287 = vpop.permute.xlu0 %286
  %v289 = vadd.f32 %v282, %v287
  %v290 = vadd.f32 %v283, %v287
  %291 = vst [vmem:[%s7] sm:$0xff] %v289
  %292 = vst [vmem:[%s7 + $0x8] sm:$0xff] %v290
  // Predicated region
  $region30: #{se_layer.1} parent=0 // pred_check
    _
  $region31: #{se_layer.1} parent=0 // pred_check_branch
    %294 = sbr.rel (0) target = $region33
  $region32: #{se_layer.1} parent=0 // pred_region
    _
  $region33: #{se_layer.1} parent=0 // pred_fallthru
    _
  // Predicated region
  $region34: #{se_layer.1} parent=0 // pred_check
    _
  $region35: #{se_layer.1} parent=0 // pred_check_branch
    %296 = sbr.rel (0) target = $region37
  $region36: #{se_layer.1} parent=0 // pred_region
    _
  $region37: #{se_layer.1} parent=0 // pred_fallthru
    _

</llo_original>
